<compile_context>
chip_gen: v5e
topology: v5e:2x2
jax: 0.10.0
libtpu: 0.0.40
codegen_flags: <defaults>
</compile_context>

<pallas_src>
import functools

import jax
import jax.numpy as jnp
from jax.experimental import pallas as pl
from jax.experimental.pallas import tpu as pltpu

_MIB = 1024 * 1024


def _round_up(x, m):
    return (x + m - 1) // m * m


# ---------------------------------------------------------------------------
# Kernel bodies
# ---------------------------------------------------------------------------

def _layernorm_bf16(x_ref, gamma_ref, beta_ref, *, eps, dim_true):
    """f32 LayerNorm over the true (unpadded) width; returns bf16 for the MXU."""
    x = x_ref[...].astype(jnp.float32)                       # (tm, dim_p)
    mean = jnp.sum(x, axis=-1, keepdims=True) / dim_true     # padded lanes are 0
    xc = x - mean
    if dim_true != x.shape[-1]:                              # mask padded lanes
        lane = jax.lax.broadcasted_iota(jnp.int32, x.shape, 1)
        xc = jnp.where(lane < dim_true, xc, 0.0)
    var = jnp.sum(xc * xc, axis=-1, keepdims=True) / dim_true
    inv = jax.lax.rsqrt(var + eps)
    xn = xc * inv * gamma_ref[...] + beta_ref[...]           # padded lanes -> 0
    return xn.astype(jnp.bfloat16)


def _ffn_kernel_resident(x_ref, gamma_ref, beta_ref, w1_ref, b1_ref, w2_ref,
                         b2_ref, o_ref, *, eps, dim_true, approximate_gelu):
    """1-D grid over token tiles; full W1/W2 resident in VMEM."""
    xn = _layernorm_bf16(x_ref, gamma_ref, beta_ref, eps=eps, dim_true=dim_true)
    h = jnp.dot(xn, w1_ref[...], preferred_element_type=jnp.float32)
    h = jax.nn.gelu(h + b1_ref[...], approximate=approximate_gelu)
    out = jnp.dot(h.astype(jnp.bfloat16), w2_ref[...],
                  preferred_element_type=jnp.float32)
    o_ref[...] = (out + b2_ref[...]).astype(o_ref.dtype)


def _ffn_kernel_tiled(x_ref, gamma_ref, beta_ref, w1_ref, b1_ref, w2_ref,
                      b2_ref, o_ref, xn_ref, *, eps, dim_true, approximate_gelu):
    """2-D grid (token tiles, hidden slices); accumulates into the f32 output
    block, which is VMEM-resident across the (last, 'arbitrary') hidden axis."""
    j = pl.program_id(1)

    @pl.when(j == 0)
    def _():
        xn_ref[...] = _layernorm_bf16(x_ref, gamma_ref, beta_ref,
                                      eps=eps, dim_true=dim_true)

    h = jnp.dot(xn_ref[...], w1_ref[...], preferred_element_type=jnp.float32)
    h = jax.nn.gelu(h + b1_ref[...], approximate=approximate_gelu)
    part = jnp.dot(h.astype(jnp.bfloat16), w2_ref[...],
                   preferred_element_type=jnp.float32)

    @pl.when(j == 0)
    def _():
        o_ref[...] = part + b2_ref[...]     # init with bias folded in

    @pl.when(j > 0)
    def _():
        o_ref[...] += part


# ---------------------------------------------------------------------------
# Planning + one-time parameter preparation (pad + bf16 cast out of hot path)
# ---------------------------------------------------------------------------

def plan_feedforward(dim, hidden, x_itemsize=4, *, force_tiled=False,
                     tiled_th=None, resident_budget=40 * _MIB,
                     tiled_budget=32 * _MIB):
    dim_p = _round_up(dim, 128)
    hidden_128 = _round_up(hidden, 128)

    def footprint(tm, th):
        act = 2 * tm * dim_p * (x_itemsize + 4)     # x in + f32 out, double-buffered
        weights = 8 * dim_p * th                    # W1+W2 slices bf16, double-buffered
        temps = tm * th * 4 + tm * dim_p * 2        # f32 hidden temp + bf16 xn
        small = 4 * (4 * dim_p + 2 * th)            # gamma/beta/b1/b2
        return act + weights + temps + small

    tm_res = 256
    if not force_tiled and footprint(tm_res, hidden_128) <= resident_budget:
        return dict(dim_p=dim_p, hidden_p=hidden_128, th=hidden_128, tm=tm_res,
                    resident=True, vmem_bytes=footprint(tm_res, hidden_128))

    # Hidden-tiled fallback: big token tile (amortise weight streaming), shrink
    # th then tm until the footprint fits the tiled budget.
    tm = 512
    th = min(tiled_th if tiled_th is not None else 512, hidden_128)
    while footprint(tm, th) > tiled_budget and th > 128:
        th //= 2
    while footprint(tm, th) > tiled_budget and tm > 128:
        tm //= 2
    hidden_p = _round_up(hidden, th)
    return dict(dim_p=dim_p, hidden_p=hidden_p, th=th, tm=tm, resident=False,
                vmem_bytes=footprint(tm, th))


def prepare_feedforward_params(gamma, beta, w1, b1, w2, b2, *, x_itemsize=4,
                               **plan_kwargs):
    """Pad feature axes to lane-dense multiples of 128 and cast weights to bf16
    ONCE (call at model init, not per forward)."""
    dim, hidden = w1.shape
    cfg = plan_feedforward(dim, hidden, x_itemsize, **plan_kwargs)
    dim_p, hidden_p = cfg["dim_p"], cfg["hidden_p"]

    gamma2 = jnp.pad(gamma.astype(jnp.float32), (0, dim_p - dim)).reshape(1, dim_p)
    beta2 = jnp.pad(beta.astype(jnp.float32), (0, dim_p - dim)).reshape(1, dim_p)
    w1p = jnp.pad(w1, ((0, dim_p - dim), (0, hidden_p - hidden))).astype(jnp.bfloat16)
    b1p = jnp.pad(b1.astype(jnp.float32), (0, hidden_p - hidden)).reshape(1, hidden_p)
    w2p = jnp.pad(w2, ((0, hidden_p - hidden), (0, dim_p - dim))).astype(jnp.bfloat16)
    b2p = jnp.pad(b2.astype(jnp.float32), (0, dim_p - dim)).reshape(1, dim_p)

    return dict(cfg=cfg, dim=dim, hidden=hidden, gamma=gamma2, beta=beta2,
                w1=w1p, b1=b1p, w2=w2p, b2=b2p)


# ---------------------------------------------------------------------------
# Forward wrapper
# ---------------------------------------------------------------------------

def feedforward(x, params, *, eps=1e-5, approximate_gelu=True):
    """x: (B, N, dim). Equivalent to torch: Linear2(GELU(Linear1(LayerNorm(x))))."""
    B, N, dim = x.shape
    assert dim == params["dim"], "params were prepared for a different dim"
    cfg = params["cfg"]
    dim_p, hidden_p, th = cfg["dim_p"], cfg["hidden_p"], cfg["th"]
    resident = cfg["resident"]

    tokens = B * N
    tm = min(cfg["tm"], _round_up(tokens, 8))
    tokens_p = _round_up(tokens, tm)

    x2 = x.reshape(tokens, dim)
    needs_pad = (tokens_p != tokens) or (dim_p != dim)
    if needs_pad:
        x2 = jnp.pad(x2, ((0, tokens_p - tokens), (0, dim_p - dim)))

    vmem_limit = int(min(max(cfg["vmem_bytes"] + 8 * _MIB, 32 * _MIB), 96 * _MIB))
    common = dict(eps=eps, dim_true=dim, approximate_gelu=approximate_gelu)

    if resident:
        out_dtype = x.dtype
        kernel = functools.partial(_ffn_kernel_resident, **common)
        grid_spec = pltpu.PrefetchScalarGridSpec(
            num_scalar_prefetch=0,
            grid=(tokens_p // tm,),
            in_specs=[
                pl.BlockSpec((tm, dim_p), lambda i: (i, 0)),          # x tile
                pl.BlockSpec((1, dim_p), lambda i: (0, 0)),           # gamma
                pl.BlockSpec((1, dim_p), lambda i: (0, 0)),           # beta
                pl.BlockSpec((dim_p, hidden_p), lambda i: (0, 0)),    # W1 (resident)
                pl.BlockSpec((1, hidden_p), lambda i: (0, 0)),        # b1
                pl.BlockSpec((hidden_p, dim_p), lambda i: (0, 0)),    # W2 (resident)
                pl.BlockSpec((1, dim_p), lambda i: (0, 0)),           # b2
            ],
            out_specs=pl.BlockSpec((tm, dim_p), lambda i: (i, 0)),
        )
        dims_sem = ("parallel",)
    else:
        # Accumulate directly into the output block => output must be f32.
        out_dtype = jnp.float32
        kernel = functools.partial(_ffn_kernel_tiled, **common)
        grid_spec = pltpu.PrefetchScalarGridSpec(
            num_scalar_prefetch=0,
            grid=(tokens_p // tm, hidden_p // th),  # reduction (hidden) axis last
            in_specs=[
                pl.BlockSpec((tm, dim_p), lambda i, j: (i, 0)),       # x tile
                pl.BlockSpec((1, dim_p), lambda i, j: (0, 0)),        # gamma
                pl.BlockSpec((1, dim_p), lambda i, j: (0, 0)),        # beta
                pl.BlockSpec((dim_p, th), lambda i, j: (0, j)),       # W1 hidden slice
                pl.BlockSpec((1, th), lambda i, j: (0, j)),           # b1 hidden slice
                pl.BlockSpec((th, dim_p), lambda i, j: (j, 0)),       # W2 hidden slice
                pl.BlockSpec((1, dim_p), lambda i, j: (0, 0)),        # b2
            ],
            out_specs=pl.BlockSpec((tm, dim_p), lambda i, j: (i, 0)),
            scratch_shapes=[pltpu.VMEM((tm, dim_p), jnp.bfloat16)],   # cached LN(x)
        )
        dims_sem = ("parallel", "arbitrary")

    out = pl.pallas_call(
        kernel,
        out_shape=jax.ShapeDtypeStruct((tokens_p, dim_p), out_dtype),
        grid_spec=grid_spec,
        compiler_params=pltpu.CompilerParams(
            dimension_semantics=dims_sem,
            vmem_limit_bytes=vmem_limit),
    )(x2, params["gamma"], params["beta"], params["w1"], params["b1"],
      params["w2"], params["b2"])

    if needs_pad:
        out = out[:tokens, :dim]
    return out.reshape(B, N, dim).astype(x.dtype)


# ---------------------------------------------------------------------------
# Self-test
# ---------------------------------------------------------------------------

def _reference(x, gamma, beta, w1, b1, w2, b2, eps=1e-5):
    mean = jnp.mean(x, axis=-1, keepdims=True)
    var = jnp.mean((x - mean) ** 2, axis=-1, keepdims=True)
    xn = (x - mean) * jax.lax.rsqrt(var + eps) * gamma + beta
    h = jax.nn.gelu(xn @ w1 + b1, approximate=False)   # torch nn.GELU (exact erf)
    return h @ w2 + b2


if __name__ == "__main__":
    def make_case(key, B, N, dim, hidden):
        kx, kg, kb, kw1, kb1, kw2, kb2 = jax.random.split(key, 7)
        x = jax.random.normal(kx, (B, N, dim), jnp.float32)
        gamma = 1.0 + 0.1 * jax.random.normal(kg, (dim,), jnp.float32)
        beta = 0.05 * jax.random.normal(kb, (dim,), jnp.float32)
        w1 = jax.random.normal(kw1, (dim, hidden), jnp.float32) * 0.05
        b1 = jax.random.normal(kb1, (hidden,), jnp.float32) * 0.01
        w2 = jax.random.normal(kw2, (hidden, dim), jnp.float32) * 0.05
        b2 = jax.random.normal(kb2, (dim,), jnp.float32) * 0.01
        return x, (gamma, beta, w1, b1, w2, b2)

    key = jax.random.PRNGKey(0)
    k1, k2 = jax.random.split(key)

    # Case 1: resident-weight path (1-D grid) -- small dim/hidden fit in VMEM.
    x, raw = make_case(k1, 2, 8, 32, 64)
    params = prepare_feedforward_params(*raw)
    assert params["cfg"]["resident"]
    out = jax.block_until_ready(feedforward(x, params))
    ref = _reference(x, *raw)
    assert out.shape == x.shape
    # bf16 MXU operands + tanh GELU vs exact-erf f32 reference: ~1e-3 deltas.
    assert jnp.allclose(out, ref, atol=2e-2, rtol=2e-2), (
        f"resident path mismatch, max abs err={float(jnp.max(jnp.abs(out - ref)))}")

    # Case 2: hidden-tiled path (2-D grid, accumulate into o_ref across j).
    x, raw = make_case(k2, 2, 8, 32, 256)
    params = prepare_feedforward_params(*raw, force_tiled=True, tiled_th=128)
    assert not params["cfg"]["resident"]
    out = jax.block_until_ready(feedforward(x, params))
    ref = _reference(x, *raw)
    assert out.shape == x.shape
    assert jnp.allclose(out, ref, atol=2e-2, rtol=2e-2), (
        f"tiled path mismatch, max abs err={float(jnp.max(jnp.abs(out - ref)))}")

    print("KERNEL_OK")
</pallas_src>

<mosaic_0001>
module attributes {stable_mosaic.version = 11 : i64} {
  func.func @_ffn_kernel_resident(%arg0: i32, %arg1: memref<16x128xf32, #tpu.memory_space<vmem>>, %arg2: memref<1x128xf32, #tpu.memory_space<vmem>>, %arg3: memref<1x128xf32, #tpu.memory_space<vmem>>, %arg4: memref<128x128xbf16, #tpu.memory_space<vmem>>, %arg5: memref<1x128xf32, #tpu.memory_space<vmem>>, %arg6: memref<128x128xbf16, #tpu.memory_space<vmem>>, %arg7: memref<1x128xf32, #tpu.memory_space<vmem>>, %arg8: memref<16x128xf32, #tpu.memory_space<vmem>>) attributes {dimension_semantics = [#tpu.dimension_semantics<parallel>], iteration_bounds = array<i64: 1>, scalar_prefetch = 0 : i64, scratch_operands = 0 : i64, tpu.core_type = #tpu.core_type<tc>, window_params = [{transform_indices = @transform_0, window_bounds = array<i64: 16, 128>}, {pipeline_mode = #tpu.pipeline_mode<synchronous>, transform_indices = @transform_1, window_bounds = array<i64: 1, 128>}, {pipeline_mode = #tpu.pipeline_mode<synchronous>, transform_indices = @transform_2, window_bounds = array<i64: 1, 128>}, {pipeline_mode = #tpu.pipeline_mode<synchronous>, transform_indices = @transform_3, window_bounds = array<i64: 128, 128>}, {pipeline_mode = #tpu.pipeline_mode<synchronous>, transform_indices = @transform_4, window_bounds = array<i64: 1, 128>}, {pipeline_mode = #tpu.pipeline_mode<synchronous>, transform_indices = @transform_5, window_bounds = array<i64: 128, 128>}, {pipeline_mode = #tpu.pipeline_mode<synchronous>, transform_indices = @transform_6, window_bounds = array<i64: 1, 128>}, {transform_indices = @transform_7, window_bounds = array<i64: 16, 128>}]} {
    %c0 = arith.constant 0 : index
    %c0_0 = arith.constant 0 : index
    %0 = vector.load %arg1[%c0, %c0_0] : memref<16x128xf32, #tpu.memory_space<vmem>>, vector<16x128xf32>
    %cst = arith.constant dense<0.000000e+00> : vector<16xf32>
    %1 = vector.multi_reduction <add>, %0, %cst [1] : vector<16x128xf32> to vector<16xf32>
    %2 = vector.shape_cast %1 : vector<16xf32> to vector<16x1xf32>
    %cst_1 = arith.constant 3.200000e+01 : f32
    %3 = vector.broadcast %cst_1 : f32 to vector<16x1xf32>
    %4 = arith.divf %2, %3 : vector<16x1xf32>
    %5 = vector.broadcast %4 : vector<16x1xf32> to vector<16x128xf32>
    %6 = arith.subf %0, %5 : vector<16x128xf32>
    %7 = tpu.iota {dimensions = array<i32: 1>} : vector<16x128xi32>
    %c32_i32 = arith.constant 32 : i32
    %8 = vector.broadcast %c32_i32 : i32 to vector<16x128xi32>
    %9 = arith.cmpi slt, %7, %8 : vector<16x128xi32>
    %cst_2 = arith.constant 0.000000e+00 : f32
    %10 = vector.broadcast %cst_2 : f32 to vector<16x128xf32>
    %11 = arith.select %9, %6, %10 : vector<16x128xi1>, vector<16x128xf32>
    %12 = arith.mulf %11, %11 : vector<16x128xf32>
    %cst_3 = arith.constant dense<0.000000e+00> : vector<16xf32>
    %13 = vector.multi_reduction <add>, %12, %cst_3 [1] : vector<16x128xf32> to vector<16xf32>
    %14 = vector.shape_cast %13 : vector<16xf32> to vector<16x1xf32>
    %cst_4 = arith.constant 3.200000e+01 : f32
    %15 = vector.broadcast %cst_4 : f32 to vector<16x1xf32>
    %16 = arith.divf %14, %15 : vector<16x1xf32>
    %cst_5 = arith.constant 9.99999974E-6 : f32
    %17 = vector.broadcast %cst_5 : f32 to vector<16x1xf32>
    %18 = arith.addf %16, %17 : vector<16x1xf32>
    %19 = math.rsqrt %18 : vector<16x1xf32>
    %20 = vector.broadcast %19 : vector<16x1xf32> to vector<16x128xf32>
    %21 = arith.mulf %11, %20 : vector<16x128xf32>
    %c0_6 = arith.constant 0 : index
    %c0_7 = arith.constant 0 : index
    %22 = vector.load %arg2[%c0_6, %c0_7] : memref<1x128xf32, #tpu.memory_space<vmem>>, vector<1x128xf32>
    %23 = vector.broadcast %22 : vector<1x128xf32> to vector<16x128xf32>
    %24 = arith.mulf %21, %23 : vector<16x128xf32>
    %c0_8 = arith.constant 0 : index
    %c0_9 = arith.constant 0 : index
    %25 = vector.load %arg3[%c0_8, %c0_9] : memref<1x128xf32, #tpu.memory_space<vmem>>, vector<1x128xf32>
    %26 = vector.broadcast %25 : vector<1x128xf32> to vector<16x128xf32>
    %27 = arith.addf %24, %26 : vector<16x128xf32>
    %28 = arith.truncf %27 : vector<16x128xf32> to vector<16x128xbf16>
    %c0_10 = arith.constant 0 : index
    %c0_11 = arith.constant 0 : index
    %29 = vector.load %arg4[%c0_10, %c0_11] : memref<128x128xbf16, #tpu.memory_space<vmem>>, vector<128x128xbf16>
    %cst_12 = arith.constant dense<0.000000e+00> : vector<16x128xf32>
    %30 = tpu.matmul %28, %29, %cst_12 {dimension_numbers = #tpu.dot_dimension_numbers<[1], [0], [0], [1], [0, 0, 1, 1], [], []>} : vector<16x128xbf16>, vector<128x128xbf16>, vector<16x128xf32> -> vector<16x128xf32>
    %c0_13 = arith.constant 0 : index
    %c0_14 = arith.constant 0 : index
    %31 = vector.load %arg5[%c0_13, %c0_14] : memref<1x128xf32, #tpu.memory_space<vmem>>, vector<1x128xf32>
    %32 = vector.broadcast %31 : vector<1x128xf32> to vector<16x128xf32>
    %33 = arith.addf %30, %32 : vector<16x128xf32>
    %34 = arith.mulf %33, %33 : vector<16x128xf32>
    %35 = arith.mulf %33, %34 : vector<16x128xf32>
    %cst_15 = arith.constant 4.471500e-02 : f32
    %36 = vector.broadcast %cst_15 : f32 to vector<16x128xf32>
    %37 = arith.mulf %36, %35 : vector<16x128xf32>
    %38 = arith.addf %33, %37 : vector<16x128xf32>
    %cst_16 = arith.constant 0.797884583 : f32
    %39 = vector.broadcast %cst_16 : f32 to vector<16x128xf32>
    %40 = arith.mulf %39, %38 : vector<16x128xf32>
    %41 = math.tanh %40 : vector<16x128xf32>
    %cst_17 = arith.constant 1.000000e+00 : f32
    %42 = vector.broadcast %cst_17 : f32 to vector<16x128xf32>
    %43 = arith.addf %42, %41 : vector<16x128xf32>
    %cst_18 = arith.constant 5.000000e-01 : f32
    %44 = vector.broadcast %cst_18 : f32 to vector<16x128xf32>
    %45 = arith.mulf %44, %43 : vector<16x128xf32>
    %46 = arith.mulf %33, %45 : vector<16x128xf32>
    %47 = arith.truncf %46 : vector<16x128xf32> to vector<16x128xbf16>
    %c0_19 = arith.constant 0 : index
    %c0_20 = arith.constant 0 : index
    %48 = vector.load %arg6[%c0_19, %c0_20] : memref<128x128xbf16, #tpu.memory_space<vmem>>, vector<128x128xbf16>
    %cst_21 = arith.constant dense<0.000000e+00> : vector<16x128xf32>
    %49 = tpu.matmul %47, %48, %cst_21 {dimension_numbers = #tpu.dot_dimension_numbers<[1], [0], [0], [1], [0, 0, 1, 1], [], []>} : vector<16x128xbf16>, vector<128x128xbf16>, vector<16x128xf32> -> vector<16x128xf32>
    %c0_22 = arith.constant 0 : index
    %c0_23 = arith.constant 0 : index
    %50 = vector.load %arg7[%c0_22, %c0_23] : memref<1x128xf32, #tpu.memory_space<vmem>>, vector<1x128xf32>
    %51 = vector.broadcast %50 : vector<1x128xf32> to vector<16x128xf32>
    %52 = arith.addf %49, %51 : vector<16x128xf32>
    %c0_24 = arith.constant 0 : index
    %c0_25 = arith.constant 0 : index
    %53 = vector.load %arg8[%c0_24, %c0_25] : memref<16x128xf32, #tpu.memory_space<vmem>>, vector<16x128xf32>
    tpu.vector_store %arg8[%c0_24, %c0_25], %52 {strides = array<i32>} : memref<16x128xf32, #tpu.memory_space<vmem>>, vector<16x128xf32>,
    return
  }
  func.func @transform_0(%arg0: i32) -> (i32, i32) {
    %c0_i32 = arith.constant 0 : i32
    %c0_i32_0 = arith.constant 0 : i32
    return %arg0, %c0_i32 : i32, i32
  }
  func.func @transform_1(%arg0: i32) -> (i32, i32) {
    %c0_i32 = arith.constant 0 : i32
    %c0_i32_0 = arith.constant 0 : i32
    %c0_i32_1 = arith.constant 0 : i32
    return %c0_i32, %c0_i32_0 : i32, i32
  }
  func.func @transform_2(%arg0: i32) -> (i32, i32) {
    %c0_i32 = arith.constant 0 : i32
    %c0_i32_0 = arith.constant 0 : i32
    %c0_i32_1 = arith.constant 0 : i32
    return %c0_i32, %c0_i32_0 : i32, i32
  }
  func.func @transform_3(%arg0: i32) -> (i32, i32) {
    %c0_i32 = arith.constant 0 : i32
    %c0_i32_0 = arith.constant 0 : i32
    %c0_i32_1 = arith.constant 0 : i32
    return %c0_i32, %c0_i32_0 : i32, i32
  }
  func.func @transform_4(%arg0: i32) -> (i32, i32) {
    %c0_i32 = arith.constant 0 : i32
    %c0_i32_0 = arith.constant 0 : i32
    %c0_i32_1 = arith.constant 0 : i32
    return %c0_i32, %c0_i32_0 : i32, i32
  }
  func.func @transform_5(%arg0: i32) -> (i32, i32) {
    %c0_i32 = arith.constant 0 : i32
    %c0_i32_0 = arith.constant 0 : i32
    %c0_i32_1 = arith.constant 0 : i32
    return %c0_i32, %c0_i32_0 : i32, i32
  }
  func.func @transform_6(%arg0: i32) -> (i32, i32) {
    %c0_i32 = arith.constant 0 : i32
    %c0_i32_0 = arith.constant 0 : i32
    %c0_i32_1 = arith.constant 0 : i32
    return %c0_i32, %c0_i32_0 : i32, i32
  }
  func.func @transform_7(%arg0: i32) -> (i32, i32) {
    %c0_i32 = arith.constant 0 : i32
    %c0_i32_0 = arith.constant 0 : i32
    return %arg0, %c0_i32 : i32, i32
  }
}

</mosaic_0001>

<llo_original>
// kernel: tpu_custom_call.1
$region0: #{tpu_custom_call.1}
  #allocation0 [shape = 'u32[]', space=smem, size = 0x4, offset = 0x4, fixed_abs, tag = 'smem constant byte address 0x4 - core index']
  #allocation1 [shape = 'u32[72,128]{1,0:T(1,128)}', space=vmem, size = 0x9000, scoped, tag = 'internal scratch']
  %s0 = inlined_call_operand.hbm [shape: f32[16,128], index: 0, kind: input, shape index: {}]
  %s1 = inlined_call_operand.hbm [shape: f32[1,128], index: 1, kind: input, shape index: {}]
  %s2 = inlined_call_operand.vmem [shape: f32[1,128], index: 2, kind: input, shape index: {}]
  %s3 = inlined_call_operand.hbm [shape: bf16[128,128], index: 3, kind: input, shape index: {}]
  %s4 = inlined_call_operand.vmem [shape: f32[1,128], index: 4, kind: input, shape index: {}]
  %s5 = inlined_call_operand.hbm [shape: bf16[128,128], index: 5, kind: input, shape index: {}]
  %s6 = inlined_call_operand.vmem [shape: f32[1,128], index: 6, kind: input, shape index: {}]
  %s7 = inlined_call_operand.hbm [shape: f32[16,128], index: 7, kind: output, shape index: {}]
  %s8 = sld [smem:[#allocation0]]
  $region54: #{tpu_custom_call.1} parent=0
    _
  %s10 = ssub.s32 1, %s8
  %s11 = scalar_select 0, %s10, %s8
  $region1: #{tpu_custom_call.1} parent=0
    #allocation2 [shape = 'u8[8192]{0}', space=vmem, size = 0x2000, scoped, tag = 'input window, operand 0, single buffered']
    #allocation3 [shape = 's32[1]{0}', space=sflag, size = 0x4, scoped, tag = 'scoped memory for tpu_custom_call.1']
    #allocation4 [shape = 's32[1]{0}', space=sflag, size = 0x4, scoped, tag = 'scoped memory for tpu_custom_call.1']
    #allocation5 [shape = 'u8[512]{0}', space=vmem, size = 0x400, scoped, tag = 'input window, operand 1, single buffered']
    #allocation6 [shape = 's32[1]{0}', space=sflag, size = 0x4, scoped, tag = 'scoped memory for tpu_custom_call.1']
    #allocation7 [shape = 'u8[32768]{0}', space=vmem, size = 0x8000, scoped, tag = 'input window, operand 3, single buffered']
    #allocation8 [shape = 'u8[32768]{0}', space=vmem, size = 0x8000, scoped, tag = 'input window, operand 5, single buffered']
    #allocation9 [shape = 's32[1]{0}', space=sflag, size = 0x4, scoped, tag = 'scoped memory for tpu_custom_call.1']
    #allocation10 [shape = 'u8[8192]{0}', space=vmem, size = 0x2000, scoped, tag = 'output window, operand 0, single buffered']
    %12 = vsyncpa [#allocation3], 0
    %13 = vsyncpa [#allocation6], 0
    %14 = vsyncpa [#allocation9], 0
    %15 = vsyncpa [#allocation4], 0
    // Predicated region
    $region2: #{tpu_custom_call.1} parent=1 // pred_check
      _
    $region3: #{tpu_custom_call.1} parent=1 // pred_check_branch
      %17 = sbr.rel (0) target = $region5
    $region4: #{tpu_custom_call.1} parent=1 // pred_region
      %19 = vsyncadd [#allocation3], 0
      %s20 = sshll.u32 %s0, 4
      %s21 = int_to_ptr.hbm [resolvable:$true] %s20
      %s22 = sshll.u32 [#allocation2], 4
      %s23 = int_to_ptr.vmem [resolvable:$true] %s22
      %28 = dma.hbm_to_vmem [thread:$0]  %s21, 256, %s23, [#allocation3], 128, 128, 8
    $region5: #{tpu_custom_call.1} parent=1 // pred_fallthru
      _
    // Predicated region
    $region6: #{tpu_custom_call.1} parent=1 // pred_check
      _
    $region7: #{tpu_custom_call.1} parent=1 // pred_check_branch
      %30 = sbr.rel (0) target = $region9
    $region8: #{tpu_custom_call.1} parent=1 // pred_region
      %32 = vsyncadd [#allocation6], 0
      %s34 = sshll.u32 %s1, 4
      %s35 = int_to_ptr.hbm [resolvable:$true] %s34
      %s36 = sshll.u32 [#allocation5], 4
      %s37 = int_to_ptr.vmem [resolvable:$true] %s36
      %39 = dma.hbm_to_vmem [thread:$0]  %s35, 16, %s37, [#allocation6]
    $region9: #{tpu_custom_call.1} parent=1 // pred_fallthru
      _
    // Predicated region
    $region10: #{tpu_custom_call.1} parent=1 // pred_check
      _
    $region11: #{tpu_custom_call.1} parent=1 // pred_check_branch
      %41 = sbr.rel (0) target = $region13
    $region12: #{tpu_custom_call.1} parent=1 // pred_region
      _
    $region13: #{tpu_custom_call.1} parent=1 // pred_fallthru
      _
    // Predicated region
    $region14: #{tpu_custom_call.1} parent=1 // pred_check
      _
    $region15: #{tpu_custom_call.1} parent=1 // pred_check_branch
      %43 = sbr.rel (0) target = $region17
    $region16: #{tpu_custom_call.1} parent=1 // pred_region
      %45 = vsyncadd [#allocation6], 0
      %s46 = sshll.u32 %s3, 4
      %s47 = int_to_ptr.hbm [resolvable:$true] %s46
      %s48 = sshll.u32 [#allocation7], 4
      %s49 = int_to_ptr.vmem [resolvable:$true] %s48
      %54 = dma.hbm_to_vmem [thread:$0]  %s47, 1024, %s49, [#allocation6], 64, 64, 4
    $region17: #{tpu_custom_call.1} parent=1 // pred_fallthru
      _
    // Predicated region
    $region18: #{tpu_custom_call.1} parent=1 // pred_check
      _
    $region19: #{tpu_custom_call.1} parent=1 // pred_check_branch
      %56 = sbr.rel (0) target = $region21
    $region20: #{tpu_custom_call.1} parent=1 // pred_region
      _
    $region21: #{tpu_custom_call.1} parent=1 // pred_fallthru
      _
    // Predicated region
    $region22: #{tpu_custom_call.1} parent=1 // pred_check
      _
    $region23: #{tpu_custom_call.1} parent=1 // pred_check_branch
      %58 = sbr.rel (0) target = $region25
    $region24: #{tpu_custom_call.1} parent=1 // pred_region
      %60 = vsyncadd [#allocation9], 0
      %s61 = sshll.u32 %s5, 4
      %s62 = int_to_ptr.hbm [resolvable:$true] %s61
      %s63 = sshll.u32 [#allocation8], 4
      %s64 = int_to_ptr.vmem [resolvable:$true] %s63
      %69 = dma.hbm_to_vmem [thread:$0]  %s62, 1024, %s64, [#allocation9], 64, 64, 4
    $region25: #{tpu_custom_call.1} parent=1 // pred_fallthru
      _
    // Predicated region
    $region26: #{tpu_custom_call.1} parent=1 // pred_check
      _
    $region27: #{tpu_custom_call.1} parent=1 // pred_check_branch
      %71 = sbr.rel (0) target = $region29
    $region28: #{tpu_custom_call.1} parent=1 // pred_region
      _
    $region29: #{tpu_custom_call.1} parent=1 // pred_fallthru
      _
    // Predicated region
    $region30: #{tpu_custom_call.1} parent=1 // pred_check
      _
    $region31: #{tpu_custom_call.1} parent=1 // pred_check_branch
      %73 = sbr.rel (0) target = $region33
    $region32: #{tpu_custom_call.1} parent=1 // pred_region
      %75 = dma.done [#allocation3], 256
    $region33: #{tpu_custom_call.1} parent=1 // pred_fallthru
      _
    // Predicated region
    $region34: #{tpu_custom_call.1} parent=1 // pred_check
      _
    $region35: #{tpu_custom_call.1} parent=1 // pred_check_branch
      %77 = sbr.rel (0) target = $region37
    $region36: #{tpu_custom_call.1} parent=1 // pred_region
      %79 = dma.done [#allocation6], 16
    $region37: #{tpu_custom_call.1} parent=1 // pred_fallthru
      _
    // Predicated region
    $region38: #{tpu_custom_call.1} parent=1 // pred_check
      _
    $region39: #{tpu_custom_call.1} parent=1 // pred_check_branch
      %81 = sbr.rel (0) target = $region41
    $region40: #{tpu_custom_call.1} parent=1 // pred_region
      %83 = dma.done [#allocation6], 1024
    $region41: #{tpu_custom_call.1} parent=1 // pred_fallthru
      _
    // Predicated region
    $region42: #{tpu_custom_call.1} parent=1 // pred_check
      _
    $region43: #{tpu_custom_call.1} parent=1 // pred_check_branch
      %85 = sbr.rel (0) target = $region45
    $region44: #{tpu_custom_call.1} parent=1 // pred_region
      %87 = dma.done [#allocation9], 1024
    $region45: #{tpu_custom_call.1} parent=1 // pred_fallthru
      _
    %v88 = vld [vmem:[#allocation2] sm:$0xff]
    %v89 = vld [vmem:[#allocation2 + $0x8] sm:$0xff]
    %90 = vadd.xlane.f32.xlu0 %v88
    %v91 = vpop.xlane.xlu0 %90
    %92 = vadd.xlane.f32.xlu0 %v89
    %v93 = vpop.xlane.xlu0 %92
    %v94 = vrcp.pop 32.0
    %v95 = vmul.f32 32.0, %v94
    %v96 = vsub.f32 1.0, %v95
    %v97 = vmul.f32 %v94, %v96
    %v98 = vadd.f32 %v94, %v97
    %vm99 = vweird.f32 %v94
    %v100 = vsel %vm99, %v94, %v98
    %v101 = vmul.f32 %v91, %v100
    %v102 = vmul.f32 %v93, %v100
    %v103 = vsub.f32 %v88, %v101
    %v104 = vsub.f32 %v89, %v102
    %v105 = vlaneseq
    %v106 = vand.u32 %v105, 127
    %vm107 = vcmp.lt.s32.totalorder %v106, 32
    %v108 = vsel %vm107, %v103, 0.0
    %v109 = vsel %vm107, %v104, 0.0
    %v110 = vmul.f32 %v108, %v108
    %v111 = vmul.f32 %v109, %v109
    %112 = vadd.xlane.f32.xlu0 %v110
    %v113 = vpop.xlane.xlu0 %112
    %114 = vadd.xlane.f32.xlu0 %v111
    %v115 = vpop.xlane.xlu0 %114
    %v116 = vmul.f32 %v113, %v100
    %v117 = vmul.f32 %v115, %v100
    %v118 = vadd.f32 %v116, 1e-05
    %v119 = vadd.f32 %v117, 1e-05
    %v120 = vrsqrt.pop %v118
    %v121 = vmul.f32 %v120, %v118
    %v122 = vmul.f32 %v121, %v120
    %v123 = vmul.f32 0.5, %v122
    %v124 = vsub.f32 1.5, %v123
    %v125 = vmul.f32 %v120, %v124
    %vm126 = vweird.f32 %v118
    %vm127 = vweird.f32 %v120
    %vm128 = vmor %vm126, %vm127
    %v129 = vsel %vm128, %v120, %v125
    %v130 = vrsqrt.pop %v119
    %v131 = vmul.f32 %v130, %v119
    %v132 = vmul.f32 %v131, %v130
    %v133 = vmul.f32 0.5, %v132
    %v134 = vsub.f32 1.5, %v133
    %v135 = vmul.f32 %v130, %v134
    %vm136 = vweird.f32 %v119
    %vm137 = vweird.f32 %v130
    %vm138 = vmor %vm136, %vm137
    %v139 = vsel %vm138, %v130, %v135
    %v140 = vmul.f32 %v108, %v129
    %v141 = vmul.f32 %v109, %v139
    %v142 = vld [vmem:[#allocation5] sm:$0x1]
    %v144 = vperm.slane %v142, 0
    %v146 = vmul.f32 %v140, %v144
    %v147 = vmul.f32 %v141, %v144
    %v148 = vld [vmem:[%s2] sm:$0x1]
    %v150 = vperm.slane %v148, 0
    %v152 = vadd.f32 %v146, %v150
    %v153 = vadd.f32 %v147, %v150
    %v154 = vpack.c.bf16 %v153, %v152
    %v155 = vld [vmem:[#allocation7] sm:$0xf]
    %v156 = vld [vmem:[#allocation7 + $0x4] sm:$0xf]
    %v157 = vld [vmem:[#allocation7 + $0x8] sm:$0xf]
    %v158 = vld [vmem:[#allocation7 + $0xc] sm:$0xf]
    %v159 = vld [vmem:[#allocation7 + $0x10] sm:$0xf]
    %v160 = vld [vmem:[#allocation7 + $0x14] sm:$0xf]
    %v161 = vld [vmem:[#allocation7 + $0x18] sm:$0xf]
    %v162 = vld [vmem:[#allocation7 + $0x1c] sm:$0xf]
    %v163 = vld [vmem:[#allocation7 + $0x20] sm:$0xf]
    %v164 = vld [vmem:[#allocation7 + $0x24] sm:$0xf]
    %v165 = vld [vmem:[#allocation7 + $0x28] sm:$0xf]
    %v166 = vld [vmem:[#allocation7 + $0x2c] sm:$0xf]
    %v167 = vld [vmem:[#allocation7 + $0x30] sm:$0xf]
    %v168 = vld [vmem:[#allocation7 + $0x34] sm:$0xf]
    %v169 = vld [vmem:[#allocation7 + $0x38] sm:$0xf]
    %v170 = vld [vmem:[#allocation7 + $0x3c] sm:$0xf]
    %v171 = vld [vmem:[%s4] sm:$0x1]
    %v173 = vperm.slane %v171, 0
    %v191 = vunpack.c.l.b16 %v155
    %v192 = vunpack.c.l.b16 %v156
    %v193 = vunpack.c.l.b16 %v157
    %v194 = vunpack.c.l.b16 %v158
    %v195 = vunpack.c.l.b16 %v159
    %v196 = vunpack.c.l.b16 %v160
    %v197 = vunpack.c.l.b16 %v161
    %v198 = vunpack.c.l.b16 %v162
    %v199 = vunpack.c.l.b16 %v163
    %v200 = vunpack.c.l.b16 %v164
    %v201 = vunpack.c.l.b16 %v165
    %v202 = vunpack.c.l.b16 %v166
    %v203 = vunpack.c.l.b16 %v167
    %v204 = vunpack.c.l.b16 %v168
    %v205 = vunpack.c.l.b16 %v169
    %v206 = vunpack.c.l.b16 %v170
    %v207 = vpack.c.b16 %v192, %v191
    %v208 = vpack.c.b16 %v194, %v193
    %v209 = vpack.c.b16 %v196, %v195
    %v210 = vpack.c.b16 %v198, %v197
    %v211 = vpack.c.b16 %v200, %v199
    %v212 = vpack.c.b16 %v202, %v201
    %v213 = vpack.c.b16 %v204, %v203
    %v214 = vpack.c.b16 %v206, %v205
    %223 = vmatpush.bf16.msra.mxu0 %v214
    %224 = vmatpush.bf16.msra.mxu0 %v213
    %225 = vmatpush.bf16.msra.mxu0 %v212
    %226 = vmatpush.bf16.msra.mxu0 %v211
    %227 = vmatpush.bf16.msra.mxu0 %v210
    %228 = vmatpush.bf16.msra.mxu0 %v209
    %229 = vmatpush.bf16.msra.mxu0 %v208
    %230 = vmatpush.bf16.msra.mxu0 %v207
    %231 = vmatmul.bf16.gmra.mxu0 %v154
    %v232 = vpop.f32.mrf.mxu0
    %v233 = vadd.f32 %v173, %v232
    %v234 = vpop.f32.mrf.mxu0
    %v235 = vadd.f32 %v173, %v234
    %236 = vdwg.mxu0
    %v237 = vmul.f32 %v233, %v233
    %v238 = vmul.f32 %v235, %v235
    %v239 = vmul.f32 %v233, %v237
    %v240 = vmul.f32 %v235, %v238
    %v241 = vmul.f32 %v239, 0.044715
    %v242 = vmul.f32 %v240, 0.044715
    %v243 = vadd.f32 %v233, %v241
    %v244 = vadd.f32 %v235, %v242
    %v245 = vmul.f32 %v243, 0.7978846
    %v246 = vmul.f32 %v244, 0.7978846
    %v247 = vtanh.pop %v245
    %v248 = vtanh.pop %v246
    %v249 = vadd.f32 %v247, 1.0
    %v250 = vadd.f32 %v248, 1.0
    %v251 = vmul.f32 %v249, 0.5
    %v252 = vmul.f32 %v250, 0.5
    %v253 = vmul.f32 %v233, %v251
    %v254 = vmul.f32 %v235, %v252
    %v255 = vpack.c.bf16 %v254, %v253
    %v256 = vld [vmem:[#allocation8] sm:$0xf]
    %v257 = vld [vmem:[#allocation8 + $0x4] sm:$0xf]
    %v258 = vld [vmem:[#allocation8 + $0x8] sm:$0xf]
    %v259 = vld [vmem:[#allocation8 + $0xc] sm:$0xf]
    %v260 = vld [vmem:[#allocation8 + $0x10] sm:$0xf]
    %v261 = vld [vmem:[#allocation8 + $0x14] sm:$0xf]
    %v262 = vld [vmem:[#allocation8 + $0x18] sm:$0xf]
    %v263 = vld [vmem:[#allocation8 + $0x1c] sm:$0xf]
    %v264 = vld [vmem:[#allocation8 + $0x20] sm:$0xf]
    %v265 = vld [vmem:[#allocation8 + $0x24] sm:$0xf]
    %v266 = vld [vmem:[#allocation8 + $0x28] sm:$0xf]
    %v267 = vld [vmem:[#allocation8 + $0x2c] sm:$0xf]
    %v268 = vld [vmem:[#allocation8 + $0x30] sm:$0xf]
    %v269 = vld [vmem:[#allocation8 + $0x34] sm:$0xf]
    %v270 = vld [vmem:[#allocation8 + $0x38] sm:$0xf]
    %v271 = vld [vmem:[#allocation8 + $0x3c] sm:$0xf]
    %v272 = vld [vmem:[%s6] sm:$0x1]
    %v274 = vperm.slane %v272, 0
    %v292 = vunpack.c.l.b16 %v256
    %v293 = vunpack.c.l.b16 %v257
    %v294 = vunpack.c.l.b16 %v258
    %v295 = vunpack.c.l.b16 %v259
    %v296 = vunpack.c.l.b16 %v260
    %v297 = vunpack.c.l.b16 %v261
    %v298 = vunpack.c.l.b16 %v262
    %v299 = vunpack.c.l.b16 %v263
    %v300 = vunpack.c.l.b16 %v264
    %v301 = vunpack.c.l.b16 %v265
    %v302 = vunpack.c.l.b16 %v266
    %v303 = vunpack.c.l.b16 %v267
    %v304 = vunpack.c.l.b16 %v268
    %v305 = vunpack.c.l.b16 %v269
    %v306 = vunpack.c.l.b16 %v270
    %v307 = vunpack.c.l.b16 %v271
    %v308 = vpack.c.b16 %v293, %v292
    %v309 = vpack.c.b16 %v295, %v294
    %v310 = vpack.c.b16 %v297, %v296
    %v311 = vpack.c.b16 %v299, %v298
    %v312 = vpack.c.b16 %v301, %v300
    %v313 = vpack.c.b16 %v303, %v302
    %v314 = vpack.c.b16 %v305, %v304
    %v315 = vpack.c.b16 %v307, %v306
    %324 = vmatpush.bf16.msra.mxu0 %v315
    %325 = vmatpush.bf16.msra.mxu0 %v314
    %326 = vmatpush.bf16.msra.mxu0 %v313
    %327 = vmatpush.bf16.msra.mxu0 %v312
    %328 = vmatpush.bf16.msra.mxu0 %v311
    %329 = vmatpush.bf16.msra.mxu0 %v310
    %330 = vmatpush.bf16.msra.mxu0 %v309
    %331 = vmatpush.bf16.msra.mxu0 %v308
    %332 = vmatmul.bf16.gmra.mxu0 %v255
    %v333 = vpop.f32.mrf.mxu0
    %v334 = vadd.f32 %v274, %v333
    %v335 = vpop.f32.mrf.mxu0
    %v336 = vadd.f32 %v274, %v335
    %337 = vdwg.mxu0
    %338 = vst [vmem:[#allocation10] sm:$0xff] %v334
    %339 = vst [vmem:[#allocation10 + $0x8] sm:$0xff] %v336
    // Predicated region
    $region46: #{tpu_custom_call.1} parent=1 // pred_check
      _
    $region47: #{tpu_custom_call.1} parent=1 // pred_check_branch
      %341 = sbr.rel (0) target = $region49
    $region48: #{tpu_custom_call.1} parent=1 // pred_region
      %343 = vsyncadd [#allocation4], 0
      %s344 = sshll.u32 [#allocation10], 4
      %s345 = int_to_ptr.vmem [resolvable:$true] %s344
      %s346 = sshll.u32 %s7, 4
      %s347 = int_to_ptr.hbm [resolvable:$true] %s346
      %352 = dma.vmem_to_hbm [thread:$0]  %s345, 256, %s347, [#allocation4], 128, 128, 8
    $region49: #{tpu_custom_call.1} parent=1 // pred_fallthru
      _
    // Predicated region
    $region50: #{tpu_custom_call.1} parent=1 // pred_check
      _
    $region51: #{tpu_custom_call.1} parent=1 // pred_check_branch
      %354 = sbr.rel (0) target = $region53
    $region52: #{tpu_custom_call.1} parent=1 // pred_region
      %356 = dma.done [#allocation4], 256
    $region53: #{tpu_custom_call.1} parent=1 // pred_fallthru
      _
    %357 = vsyncpa [#allocation3], 1
    %358 = vsyncpa [#allocation6], 1
    %359 = vsyncpa [#allocation9], 1
    %360 = vsyncpa [#allocation4], 1

</llo_original>
